<compile_context>
chip_gen: v6e
topology: v6e:2x2x1
jax: 0.10.0
libtpu: 0.0.40
codegen_flags: <defaults>
</compile_context>

<pallas_src>
import math

import jax
import jax.numpy as jnp
from jax import lax
from jax.experimental import pallas as pl
from jax.experimental.pallas import tpu as pltpu


def _round_up(x: int, m: int) -> int:
    return ((x + m - 1) // m) * m


def _dgi_score_kernel(ws_ref, f_ref, o_ref):
    # ws_ref: (1, H)        precomputed (weight @ summary) row, resident in VMEM
    # f_ref:  (TILE_N, H)   feature tile (streamed / double-buffered)
    # o_ref:  (1, TILE_N)   lane-dense output row for this tile
    scores = lax.dot_general(
        ws_ref[...], f_ref[...],
        dimension_numbers=(((1,), (1,)), ((), ())),   # contract over H (trans_b form)
        preferred_element_type=jnp.float32,
    )                                                 # (1, TILE_N), f32 accumulate
    o_ref[...] = scores.astype(o_ref.dtype)


def discriminator_forward(features, summary, weight, *, tile_n=1024):
    """features: (N, H), summary: (H,), weight: (H, H) -> (N,)"""
    n, h = features.shape
    assert weight.shape == (h, h)
    assert summary.shape == (h,)

    # Hoist the tiny GEMV out of the kernel (keeps weight out of VMEM).
    ws = jnp.dot(weight, summary, preferred_element_type=jnp.float32)
    ws_row = ws.reshape(1, h).astype(features.dtype)

    # Tile size: multiple of 128 lanes for the lane-dense output row, capped so
    # 2 (double-buffer) x TILE_N x H x itemsize stays well under v7x's VMEM.
    itemsize = jnp.dtype(features.dtype).itemsize
    tile_n = max(128, _round_up(tile_n, 128))
    tile_n = min(tile_n, _round_up(max(n, 1), 128))
    # Keep a single feature tile <= ~8 MiB (double-buffered -> <= ~16 MiB).
    while tile_n > 128 and tile_n * h * itemsize > (8 << 20):
        tile_n //= 2

    n_pad = _round_up(n, tile_n)
    if n_pad != n:
        features = jnp.pad(features, ((0, n_pad - n), (0, 0)))
    num_tiles = n_pad // tile_n

    # NOTE: H is the full last dim of every block, so no (…,128) divisibility
    # constraint applies; for large real workloads pad H to a multiple of 128
    # upstream to avoid wasted lane bandwidth.
    out = pl.pallas_call(
        _dgi_score_kernel,
        out_shape=jax.ShapeDtypeStruct((1, n_pad), features.dtype),
        grid_spec=pl.GridSpec(
            grid=(num_tiles,),
            in_specs=[
                pl.BlockSpec((1, h), lambda i: (0, 0)),        # ws row, resident
                pl.BlockSpec((tile_n, h), lambda i: (i, 0)),   # feature tile stream
            ],
            out_specs=pl.BlockSpec((1, tile_n), lambda i: (0, i)),
        ),
        compiler_params=pltpu.CompilerParams(
            dimension_semantics=("parallel",),     # megacore sharding on v7x
            vmem_limit_bytes=64 << 20,
        ),
        cost_estimate=pl.CostEstimate(
            flops=2 * n_pad * h,
            transcendentals=0,
            bytes_accessed=n_pad * h * itemsize + h * itemsize + n_pad * itemsize,
        ),
    )(ws_row, features)

    return out.reshape(n_pad)[:n]


def init_discriminator_weight(key, n_out, dtype=jnp.float32):
    # Matches PyTorch: uniform_(-1/sqrt(n_out), 1/sqrt(n_out))
    bound = 1.0 / math.sqrt(n_out)
    return jax.random.uniform(key, (n_out, n_out), dtype=dtype,
                              minval=-bound, maxval=bound)


if __name__ == "__main__":
    key = jax.random.PRNGKey(0)
    k_w, k_f, k_s = jax.random.split(key, 3)

    N, H = 8, 32  # N nodes, n_out = n_hidden = H

    weight = init_discriminator_weight(k_w, H)
    features = jax.random.normal(k_f, (N, H), dtype=jnp.float32)
    summary = jax.random.normal(k_s, (H,), dtype=jnp.float32)

    out = discriminator_forward(features, summary, weight)
    out = jax.block_until_ready(out)

    # Pure-JAX reference check of the same semantics.
    ref = features @ (weight @ summary)
    assert out.shape == (N,)
    assert jnp.allclose(out, ref, atol=1e-5, rtol=1e-5)

    # Also exercise a ragged / multi-tile shape to validate the tiling path.
    N2, H2 = 300, 32
    f2 = jax.random.normal(jax.random.PRNGKey(1), (N2, H2), dtype=jnp.float32)
    out2 = jax.block_until_ready(discriminator_forward(f2, summary, weight, tile_n=128))
    ref2 = f2 @ (weight @ summary)
    assert out2.shape == (N2,)
    assert jnp.allclose(out2, ref2, atol=1e-5, rtol=1e-5)

    # bf16 feature path (halved HBM bytes, f32 accumulation in-kernel).
    f3 = jax.random.normal(jax.random.PRNGKey(2), (257, H), dtype=jnp.bfloat16)
    out3 = jax.block_until_ready(discriminator_forward(f3, summary, weight))
    ref3 = f3.astype(jnp.float32) @ (weight @ summary)
    assert out3.shape == (257,)
    assert jnp.allclose(out3.astype(jnp.float32), ref3, atol=1e-1, rtol=1e-1)

    print("KERNEL_OK")
</pallas_src>

<mosaic_0001>
module attributes {stable_mosaic.version = 11 : i64} {
  func.func @_dgi_score_kernel(%arg0: i32, %arg1: memref<1x32xf32, #tpu.memory_space<vmem>>, %arg2: memref<128x32xf32, #tpu.memory_space<vmem>>, %arg3: memref<1x128xf32, #tpu.memory_space<vmem>>) attributes {dimension_semantics = [#tpu.dimension_semantics<parallel>], iteration_bounds = array<i64: 1>, scalar_prefetch = 0 : i64, scratch_operands = 0 : i64, tpu.core_type = #tpu.core_type<tc>, window_params = [{pipeline_mode = #tpu.pipeline_mode<synchronous>, transform_indices = @transform_0, window_bounds = array<i64: 1, 32>}, {transform_indices = @transform_1, window_bounds = array<i64: 128, 32>}, {transform_indices = @transform_2, window_bounds = array<i64: 1, 128>}]} {
    %c0 = arith.constant 0 : index
    %c0_0 = arith.constant 0 : index
    %0 = vector.load %arg1[%c0, %c0_0] : memref<1x32xf32, #tpu.memory_space<vmem>>, vector<1x32xf32>
    %c0_1 = arith.constant 0 : index
    %c0_2 = arith.constant 0 : index
    %1 = vector.load %arg2[%c0_1, %c0_2] : memref<128x32xf32, #tpu.memory_space<vmem>>, vector<128x32xf32>
    %cst = arith.constant dense<0.000000e+00> : vector<1x128xf32>
    %2 = tpu.matmul %0, %1, %cst {dimension_numbers = #tpu.dot_dimension_numbers<[1], [1], [0], [0], [0, 0, 1, 0], [], []>} : vector<1x32xf32>, vector<128x32xf32>, vector<1x128xf32> -> vector<1x128xf32>
    %c0_3 = arith.constant 0 : index
    %c0_4 = arith.constant 0 : index
    %3 = vector.load %arg3[%c0_3, %c0_4] : memref<1x128xf32, #tpu.memory_space<vmem>>, vector<1x128xf32>
    tpu.vector_store %arg3[%c0_3, %c0_4], %2 {strides = array<i32>} : memref<1x128xf32, #tpu.memory_space<vmem>>, vector<1x128xf32>,
    return
  }
  func.func @transform_0(%arg0: i32) -> (i32, i32) {
    %c0_i32 = arith.constant 0 : i32
    %c0_i32_0 = arith.constant 0 : i32
    %c0_i32_1 = arith.constant 0 : i32
    return %c0_i32, %c0_i32_0 : i32, i32
  }
  func.func @transform_1(%arg0: i32) -> (i32, i32) {
    %c0_i32 = arith.constant 0 : i32
    %c0_i32_0 = arith.constant 0 : i32
    return %arg0, %c0_i32 : i32, i32
  }
  func.func @transform_2(%arg0: i32) -> (i32, i32) {
    %c0_i32 = arith.constant 0 : i32
    %c0_i32_0 = arith.constant 0 : i32
    return %c0_i32, %arg0 : i32, i32
  }
}

</mosaic_0001>

<llo_original>
// kernel: tpu_custom_call.1
$region0: #{tpu_custom_call.1}
  #allocation0 [shape = 'u32[]', space=smem, size = 0x4, offset = 0x4, fixed_abs, tag = 'smem constant byte address 0x4 - core index']
  #allocation1 [shape = 'u32[144,128]{1,0:T(1,128)}', space=vmem, size = 0x12000, scoped, tag = 'internal scratch']
  %s0 = inlined_call_operand.vmem [shape: f32[1,32], index: 0, kind: input, shape index: {}]
  %s1 = inlined_call_operand.vmem [shape: f32[128,32], index: 1, kind: input, shape index: {}]
  %s2 = inlined_call_operand.hbm [shape: f32[1,128], index: 2, kind: output, shape index: {}]
  %s3 = sld [smem:[#allocation0]]
  $region18: #{tpu_custom_call.1} parent=0
    _
  %s5 = ssub.s32 1, %s3
  %s6 = scalar_select 0, %s5, %s3
  $region1: #{tpu_custom_call.1} parent=0
    #allocation2 [shape = 'u8[512]{0}', space=vmem, size = 0x400, scoped, tag = 'output window, operand 0, single buffered']
    #allocation3 [shape = 's32[1]{0}', space=sflag, size = 0x4, scoped, tag = 'scoped memory for tpu_custom_call.1']
    %7 = vsyncpa [#allocation3], 0
    // Predicated region
    $region2: #{tpu_custom_call.1} parent=1 // pred_check
      _
    $region3: #{tpu_custom_call.1} parent=1 // pred_check_branch
      %9 = sbr.rel (0) target = $region5
    $region4: #{tpu_custom_call.1} parent=1 // pred_region
      _
    $region5: #{tpu_custom_call.1} parent=1 // pred_fallthru
      _
    // Predicated region
    $region6: #{tpu_custom_call.1} parent=1 // pred_check
      _
    $region7: #{tpu_custom_call.1} parent=1 // pred_check_branch
      %11 = sbr.rel (0) target = $region9
    $region8: #{tpu_custom_call.1} parent=1 // pred_region
      _
    $region9: #{tpu_custom_call.1} parent=1 // pred_fallthru
      _
    %v12 = vld [vmem:[%s0] sm:$0x1]
    %v13 = vld [vmem:[%s1] sm:$0xff]
    %v14 = vld [vmem:[%s1 + $0x8] sm:$0xff]
    %v15 = vld [vmem:[%s1 + $0x10] sm:$0xff]
    %v16 = vld [vmem:[%s1 + $0x18] sm:$0xff]
    %v17 = vld [vmem:[%s1 + $0x20] sm:$0xff]
    %v18 = vld [vmem:[%s1 + $0x28] sm:$0xff]
    %v19 = vld [vmem:[%s1 + $0x30] sm:$0xff]
    %v20 = vld [vmem:[%s1 + $0x38] sm:$0xff]
    %v21 = vld [vmem:[%s1 + $0x40] sm:$0xff]
    %v22 = vld [vmem:[%s1 + $0x48] sm:$0xff]
    %v23 = vld [vmem:[%s1 + $0x50] sm:$0xff]
    %v24 = vld [vmem:[%s1 + $0x58] sm:$0xff]
    %v25 = vld [vmem:[%s1 + $0x60] sm:$0xff]
    %v26 = vld [vmem:[%s1 + $0x68] sm:$0xff]
    %v27 = vld [vmem:[%s1 + $0x70] sm:$0xff]
    %v28 = vld [vmem:[%s1 + $0x78] sm:$0xff]
    %vm29 = vcmask 261120
    %v31 = vsel %vm29, %v12, 0
    %v34 = vsel %vm29, %v13, 0
    %v37 = vsel %vm29, %v14, 0
    %v40 = vsel %vm29, %v15, 0
    %v43 = vsel %vm29, %v16, 0
    %v46 = vsel %vm29, %v17, 0
    %v49 = vsel %vm29, %v18, 0
    %v52 = vsel %vm29, %v19, 0
    %v55 = vsel %vm29, %v20, 0
    %v58 = vsel %vm29, %v21, 0
    %v61 = vsel %vm29, %v22, 0
    %v64 = vsel %vm29, %v23, 0
    %v67 = vsel %vm29, %v24, 0
    %v70 = vsel %vm29, %v25, 0
    %v73 = vsel %vm29, %v26, 0
    %v76 = vsel %vm29, %v27, 0
    %v79 = vsel %vm29, %v28, 0
    %81 = vmatprep.subr.mxu0 0.0
    %82 = vmatpush1.xpose.msra.mxu0 %v79
    %83 = vmatprep.subr.mxu0 0.0
    %84 = vmatpush1.xpose.msra.mxu0 %v76
    %85 = vmatprep.subr.mxu0 0.0
    %86 = vmatpush1.xpose.msra.mxu0 %v73
    %87 = vmatprep.subr.mxu0 0.0
    %88 = vmatpush1.xpose.msra.mxu0 %v70
    %89 = vmatprep.subr.mxu0 0.0
    %90 = vmatpush1.xpose.msra.mxu0 %v67
    %91 = vmatprep.subr.mxu0 0.0
    %92 = vmatpush1.xpose.msra.mxu0 %v64
    %93 = vmatprep.subr.mxu0 0.0
    %94 = vmatpush1.xpose.msra.mxu0 %v61
    %95 = vmatprep.subr.mxu0 0.0
    %96 = vmatpush1.xpose.msra.mxu0 %v58
    %97 = vmatprep.subr.mxu0 0.0
    %98 = vmatpush1.xpose.msra.mxu0 %v55
    %99 = vmatprep.subr.mxu0 0.0
    %100 = vmatpush1.xpose.msra.mxu0 %v52
    %101 = vmatprep.subr.mxu0 0.0
    %102 = vmatpush1.xpose.msra.mxu0 %v49
    %103 = vmatprep.subr.mxu0 0.0
    %104 = vmatpush1.xpose.msra.mxu0 %v46
    %105 = vmatprep.subr.mxu0 0.0
    %106 = vmatpush1.xpose.msra.mxu0 %v43
    %107 = vmatprep.subr.mxu0 0.0
    %108 = vmatpush1.xpose.msra.mxu0 %v40
    %109 = vmatprep.subr.mxu0 0.0
    %110 = vmatpush1.xpose.msra.mxu0 %v37
    %111 = vmatprep.subr.mxu0 0.0
    %112 = vmatpush1.xpose.msra.mxu0 %v34
    %113 = vmatprep.subr.mxu0 0.0
    %114 = vmatpush2.xpose.msra.mxu0 0.0
    %115 = vmatprep.subr.mxu0 0.0
    %116 = vmatpush2.xpose.msra.mxu0 0.0
    %117 = vmatprep.subr.mxu0 0.0
    %118 = vmatpush2.xpose.msra.mxu0 0.0
    %119 = vmatprep.subr.mxu0 0.0
    %120 = vmatpush2.xpose.msra.mxu0 0.0
    %121 = vmatprep.subr.mxu0 0.0
    %122 = vmatpush2.xpose.msra.mxu0 0.0
    %123 = vmatprep.subr.mxu0 0.0
    %124 = vmatpush2.xpose.msra.mxu0 0.0
    %125 = vmatprep.subr.mxu0 0.0
    %126 = vmatpush2.xpose.msra.mxu0 0.0
    %127 = vmatprep.subr.mxu0 0.0
    %128 = vmatpush2.xpose.msra.mxu0 0.0
    %129 = vmatprep.subr.mxu0 0.0
    %130 = vmatpush2.xpose.msra.mxu0 0.0
    %131 = vmatprep.subr.mxu0 0.0
    %132 = vmatpush2.xpose.msra.mxu0 0.0
    %133 = vmatprep.subr.mxu0 0.0
    %134 = vmatpush2.xpose.msra.mxu0 0.0
    %135 = vmatprep.subr.mxu0 0.0
    %136 = vmatpush2.xpose.msra.mxu0 0.0
    %137 = vmatprep.subr.mxu0 0.0
    %138 = vmatpush2.xpose.msra.mxu0 0.0
    %139 = vmatprep.subr.mxu0 0.0
    %140 = vmatpush2.xpose.msra.mxu0 0.0
    %141 = vmatprep.subr.mxu0 0.0
    %142 = vmatpush2.xpose.msra.mxu0 0.0
    %143 = vmatprep.subr.mxu0 0.0
    %144 = vmatpush2.xpose.msra.mxu0 0.0
    %145 = vmatprep.mubr.f32.mxu0 0.0
    %146 = vmatmul.mubr.f32.gmra.mxu0 %v31
    %v147 = vpop.f32.mrf.mxu0
    %v148 = vadd.f32 0.0, %v147
    %v149 = vpop.f32.mrf.mxu0
    %150 = vdwg.mxu0
    %151 = vst [vmem:[#allocation2] sm:$0x1] %v148
    // Predicated region
    $region10: #{tpu_custom_call.1} parent=1 // pred_check
      _
    $region11: #{tpu_custom_call.1} parent=1 // pred_check_branch
      %153 = sbr.rel (0) target = $region13
    $region12: #{tpu_custom_call.1} parent=1 // pred_region
      %s155 = ssub.s32 16, 16
      %156 = vsyncadd [#allocation3], %s155
      %s158 = sshll.u32 [#allocation2], 4
      %s159 = int_to_ptr.vmem [resolvable:$true] %s158
      %161 = dma.vmem_to_hbm [thread:$0]  %s159, 16, %s2, [#allocation3]
    $region13: #{tpu_custom_call.1} parent=1 // pred_fallthru
      _
    // Predicated region
    $region14: #{tpu_custom_call.1} parent=1 // pred_check
      _
    $region15: #{tpu_custom_call.1} parent=1 // pred_check_branch
      %163 = sbr.rel (0) target = $region17
    $region16: #{tpu_custom_call.1} parent=1 // pred_region
      %164 = dma.done [#allocation3], 16
    $region17: #{tpu_custom_call.1} parent=1 // pred_fallthru
      _
    %165 = vsyncpa [#allocation3], 1

</llo_original>
